<compile_context>
chip_gen: v7x
topology: tpu7x:2x2x1
jax: 0.10.0
libtpu: 0.0.40
codegen_flags: <defaults>
</compile_context>

<pallas_src>
import functools  # noqa: F401  (kept for users who want to partial-in statics)

import numpy as np
import jax
import jax.numpy as jnp
from jax import lax
from jax.experimental import pallas as pl
from jax.experimental.pallas import tpu as pltpu

# ---- deterministic weights, exactly as in the PyTorch script ----------------
# (kept only for the reference check; the kernel bakes the +/-1 structure in)
filter_vals = np.array(
    [[-1, -1, 1, 1],
     [-1, -1, 1, 1],
     [-1, -1, 1, 1],
     [-1, -1, 1, 1]], dtype=np.float32)
filter_1 = filter_vals
filter_2 = -filter_1
filter_3 = filter_1.T
filter_4 = -filter_3
FILTERS = np.stack([filter_1, filter_2, filter_3, filter_4])    # (CO=4, KH=4, KW=4)

CO, KH, KW = FILTERS.shape
WEIGHT_OIHW = jnp.asarray(FILTERS[:, None, :, :], dtype=jnp.float32)   # (4,1,4,4)

TB_CAP = 64   # images per grid step (conservative: fits 32 MiB scoped VMEM on v7x)


def conv_relu_kernel(x_ref, conv_ref, relu_ref):
    """Separable, constant-folded conv(1->4, k=4, valid) fused with ReLU.

    x_ref:    VMEM (TB*H, Wp)        TB images, rows merged, lane-padded width
    conv_ref: VMEM (TB, CO, OH, OW)  raw conv output, NCHW, exact (unpadded) OW
    relu_ref: VMEM (TB, CO, OH, OW)  relu(conv), NCHW, exact (unpadded) OW
    """
    tb, _, OH, OW = conv_ref.shape
    Wp = x_ref.shape[1]
    H = x_ref.shape[0] // tb

    x0 = x_ref[...]                                      # (TB*H, Wp)

    # Lane-axis shifts through the XLU: xk[r, j] == x0[r, j + k] for j + k < Wp.
    # Wrapped lanes only land at j >= OW, which is trimmed before the store.
    x1 = pltpu.roll(x0, shift=Wp - 1, axis=1)
    x2 = pltpu.roll(x0, shift=Wp - 2, axis=1)
    x3 = pltpu.roll(x0, shift=Wp - 3, axis=1)

    a = x0 + x1
    b = x2 + x3
    # Split the merged row axis back into (image, row); H % 8 == 0 so this is a
    # layout-trivial relabeling of the sublane axis.
    row_r = (b - a).reshape(tb, H, Wp)      # horizontal taps [-1,-1,+1,+1] (filter_1 rows)
    row_box = (a + b).reshape(tb, H, Wp)    # horizontal taps [+1,+1,+1,+1] (filter_3 rows)

    # Vertical 4-tap combine via cheap sublane-offset slices, then trim the
    # lane padding so only the valid OW columns are ever stored.
    out0 = (row_r[:, 0:OH] + row_r[:, 1:OH + 1]
            + row_r[:, 2:OH + 2] + row_r[:, 3:OH + 3])[:, :, :OW]        # filter_1
    out2 = ((row_box[:, 2:OH + 2] + row_box[:, 3:OH + 3])
            - (row_box[:, 0:OH] + row_box[:, 1:OH + 1]))[:, :, :OW]      # filter_3

    conv_ref[:, 0, :, :] = out0
    conv_ref[:, 1, :, :] = -out0          # filter_2 = -filter_1
    conv_ref[:, 2, :, :] = out2
    conv_ref[:, 3, :, :] = -out2          # filter_4 = -filter_3

    relu_ref[:, 0, :, :] = jnp.maximum(out0, 0.0)
    relu_ref[:, 1, :, :] = jnp.maximum(-out0, 0.0)
    relu_ref[:, 2, :, :] = jnp.maximum(out2, 0.0)
    relu_ref[:, 3, :, :] = jnp.maximum(-out2, 0.0)


def net_forward(x_nchw, *, tb=None):
    """Equivalent of Net.forward: returns (conv_x, activated_x), both NCHW f32."""
    N, Cin, H, W = x_nchw.shape
    assert Cin == 1, "Net's conv expects a single input channel"
    assert H >= KH and W >= KW
    OH, OW = H - KH + 1, W - KW + 1

    # Lane-padded input width (padding lives only on the small input stream;
    # outputs are written unpadded).
    Wp = pl.cdiv(W, 128) * 128

    if tb is None:
        # Amortize per-step overhead with many images per step, but keep
        # >= 2 grid steps when possible so v7x can shard across its 2 TCs.
        tb = max(1, min(TB_CAP, N // 2 if N >= 2 else 1))
    num_steps = pl.cdiv(N, tb)
    Np = num_steps * tb

    x = x_nchw.reshape(N, H, W).astype(jnp.float32)
    if Np != N or Wp != W:
        x = jnp.pad(x, ((0, Np - N), (0, 0), (0, Wp - W)))
    # Merge (image, row) -> one axis: contiguous, free metadata reshape in XLA.
    x2d = x.reshape(Np * H, Wp)

    conv, relu = pl.pallas_call(
        conv_relu_kernel,
        out_shape=(
            jax.ShapeDtypeStruct((Np, CO, OH, OW), jnp.float32),
            jax.ShapeDtypeStruct((Np, CO, OH, OW), jnp.float32),
        ),
        grid=(num_steps,),   # batch-parallel; Pallas double-buffers HBM<->VMEM DMAs
        in_specs=[pl.BlockSpec((tb * H, Wp), lambda n: (n, 0))],
        out_specs=(
            # Trailing dims equal the full array dims -> legal block shape; the
            # outputs carry no lane padding, so no wrapper slice pass is needed.
            pl.BlockSpec((tb, CO, OH, OW), lambda n: (n, 0, 0, 0)),
            pl.BlockSpec((tb, CO, OH, OW), lambda n: (n, 0, 0, 0)),
        ),
        compiler_params=pltpu.CompilerParams(
            dimension_semantics=("parallel",),     # megacore sharding on v7x
            vmem_limit_bytes=32 * 1024 * 1024,     # safe on v5e/v6e/v7x for TB_CAP=64
        ),
    )(x2d)

    if Np != N:   # drop batch padding only (no per-element output pass otherwise)
        conv = conv[:N]
        relu = relu[:N]
    return conv, relu


if __name__ == "__main__":
    key = jax.random.PRNGKey(0)
    # small NCHW input consistent with Conv2d(1, 4, kernel_size=(4,4))
    x = jax.random.normal(key, (2, 1, 16, 16), dtype=jnp.float32)

    conv_x, activated_x = net_forward(x)
    conv_x = jax.block_until_ready(conv_x)
    activated_x = jax.block_until_ready(activated_x)

    # reference check against XLA's conv (PyTorch Conv2d == cross-correlation)
    ref_conv = lax.conv_general_dilated(
        x, WEIGHT_OIHW, window_strides=(1, 1), padding="VALID",
        dimension_numbers=("NCHW", "OIHW", "NCHW"))
    ref_relu = jnp.maximum(ref_conv, 0.0)

    assert conv_x.shape == (2, 4, 13, 13)
    assert activated_x.shape == (2, 4, 13, 13)
    np.testing.assert_allclose(np.asarray(conv_x), np.asarray(ref_conv),
                               rtol=1e-5, atol=1e-5)
    np.testing.assert_allclose(np.asarray(activated_x), np.asarray(ref_relu),
                               rtol=1e-5, atol=1e-5)

    print("KERNEL_OK")
</pallas_src>

<mosaic_0001>
module attributes {stable_mosaic.version = 11 : i64} {
  func.func @conv_relu_kernel(%arg0: i32, %arg1: memref<16x128xf32, #tpu.memory_space<vmem>>, %arg2: memref<1x4x13x13xf32, #tpu.memory_space<vmem>>, %arg3: memref<1x4x13x13xf32, #tpu.memory_space<vmem>>) attributes {dimension_semantics = [#tpu.dimension_semantics<parallel>], iteration_bounds = array<i64: 2>, scalar_prefetch = 0 : i64, scratch_operands = 0 : i64, tpu.core_type = #tpu.core_type<tc>, window_params = [{transform_indices = @transform_0, window_bounds = array<i64: 16, 128>}, {transform_indices = @transform_1, window_bounds = array<i64: 1, 4, 13, 13>}, {transform_indices = @transform_2, window_bounds = array<i64: 1, 4, 13, 13>}]} {
    %c0 = arith.constant 0 : index
    %c0_0 = arith.constant 0 : index
    %0 = vector.load %arg1[%c0, %c0_0] : memref<16x128xf32, #tpu.memory_space<vmem>>, vector<16x128xf32>
    %c127_i32 = arith.constant 127 : i32
    %1 = tpu.dynamic_rotate %0 by %c127_i32 dim 1 : vector<16x128xf32>, i32 -> vector<16x128xf32>
    %c126_i32 = arith.constant 126 : i32
    %2 = tpu.dynamic_rotate %0 by %c126_i32 dim 1 : vector<16x128xf32>, i32 -> vector<16x128xf32>
    %c125_i32 = arith.constant 125 : i32
    %3 = tpu.dynamic_rotate %0 by %c125_i32 dim 1 : vector<16x128xf32>, i32 -> vector<16x128xf32>
    %4 = arith.addf %0, %1 : vector<16x128xf32>
    %5 = arith.addf %2, %3 : vector<16x128xf32>
    %6 = arith.subf %5, %4 : vector<16x128xf32>
    %7 = vector.shape_cast %6 : vector<16x128xf32> to vector<1x16x128xf32>
    %8 = arith.addf %4, %5 : vector<16x128xf32>
    %9 = vector.shape_cast %8 : vector<16x128xf32> to vector<1x16x128xf32>
    %10 = vector.extract_strided_slice %7 {offsets = [0, 0, 0], sizes = [1, 13, 128], strides = [1, 1, 1]} : vector<1x16x128xf32> to vector<1x13x128xf32>
    %11 = vector.extract_strided_slice %7 {offsets = [0, 1, 0], sizes = [1, 13, 128], strides = [1, 1, 1]} : vector<1x16x128xf32> to vector<1x13x128xf32>
    %12 = arith.addf %10, %11 : vector<1x13x128xf32>
    %13 = vector.extract_strided_slice %7 {offsets = [0, 2, 0], sizes = [1, 13, 128], strides = [1, 1, 1]} : vector<1x16x128xf32> to vector<1x13x128xf32>
    %14 = arith.addf %12, %13 : vector<1x13x128xf32>
    %15 = vector.extract_strided_slice %7 {offsets = [0, 3, 0], sizes = [1, 13, 128], strides = [1, 1, 1]} : vector<1x16x128xf32> to vector<1x13x128xf32>
    %16 = arith.addf %14, %15 : vector<1x13x128xf32>
    %17 = vector.extract_strided_slice %16 {offsets = [0, 0, 0], sizes = [1, 13, 13], strides = [1, 1, 1]} : vector<1x13x128xf32> to vector<1x13x13xf32>
    %18 = vector.extract_strided_slice %9 {offsets = [0, 2, 0], sizes = [1, 13, 128], strides = [1, 1, 1]} : vector<1x16x128xf32> to vector<1x13x128xf32>
    %19 = vector.extract_strided_slice %9 {offsets = [0, 3, 0], sizes = [1, 13, 128], strides = [1, 1, 1]} : vector<1x16x128xf32> to vector<1x13x128xf32>
    %20 = arith.addf %18, %19 : vector<1x13x128xf32>
    %21 = vector.extract_strided_slice %9 {offsets = [0, 0, 0], sizes = [1, 13, 128], strides = [1, 1, 1]} : vector<1x16x128xf32> to vector<1x13x128xf32>
    %22 = vector.extract_strided_slice %9 {offsets = [0, 1, 0], sizes = [1, 13, 128], strides = [1, 1, 1]} : vector<1x16x128xf32> to vector<1x13x128xf32>
    %23 = arith.addf %21, %22 : vector<1x13x128xf32>
    %24 = arith.subf %20, %23 : vector<1x13x128xf32>
    %25 = vector.extract_strided_slice %24 {offsets = [0, 0, 0], sizes = [1, 13, 13], strides = [1, 1, 1]} : vector<1x13x128xf32> to vector<1x13x13xf32>
    %c0_1 = arith.constant 0 : index
    %c0_2 = arith.constant 0 : index
    %c0_3 = arith.constant 0 : index
    %c0_4 = arith.constant 0 : index
    %26 = vector.load %arg2[%c0_1, %c0_2, %c0_3, %c0_4] : memref<1x4x13x13xf32, #tpu.memory_space<vmem>>, vector<1x1x13x13xf32>
    %27 = vector.shape_cast %26 : vector<1x1x13x13xf32> to vector<1x13x13xf32>
    %28 = vector.shape_cast %17 : vector<1x13x13xf32> to vector<1x1x13x13xf32>
    tpu.vector_store %arg2[%c0_1, %c0_2, %c0_3, %c0_4], %28 {strides = array<i32>} : memref<1x4x13x13xf32, #tpu.memory_space<vmem>>, vector<1x1x13x13xf32>,
    %cst = arith.constant 0.000000e+00 : f32
    %29 = vector.broadcast %cst : f32 to vector<1x13x13xf32>
    %30 = arith.subf %29, %17 : vector<1x13x13xf32>
    %c0_5 = arith.constant 0 : index
    %c1 = arith.constant 1 : index
    %c0_6 = arith.constant 0 : index
    %c0_7 = arith.constant 0 : index
    %31 = vector.load %arg2[%c0_5, %c1, %c0_6, %c0_7] : memref<1x4x13x13xf32, #tpu.memory_space<vmem>>, vector<1x1x13x13xf32>
    %32 = vector.shape_cast %31 : vector<1x1x13x13xf32> to vector<1x13x13xf32>
    %33 = vector.shape_cast %30 : vector<1x13x13xf32> to vector<1x1x13x13xf32>
    tpu.vector_store %arg2[%c0_5, %c1, %c0_6, %c0_7], %33 {strides = array<i32>} : memref<1x4x13x13xf32, #tpu.memory_space<vmem>>, vector<1x1x13x13xf32>,
    %c0_8 = arith.constant 0 : index
    %c2 = arith.constant 2 : index
    %c0_9 = arith.constant 0 : index
    %c0_10 = arith.constant 0 : index
    %34 = vector.load %arg2[%c0_8, %c2, %c0_9, %c0_10] : memref<1x4x13x13xf32, #tpu.memory_space<vmem>>, vector<1x1x13x13xf32>
    %35 = vector.shape_cast %34 : vector<1x1x13x13xf32> to vector<1x13x13xf32>
    %36 = vector.shape_cast %25 : vector<1x13x13xf32> to vector<1x1x13x13xf32>
    tpu.vector_store %arg2[%c0_8, %c2, %c0_9, %c0_10], %36 {strides = array<i32>} : memref<1x4x13x13xf32, #tpu.memory_space<vmem>>, vector<1x1x13x13xf32>,
    %cst_11 = arith.constant 0.000000e+00 : f32
    %37 = vector.broadcast %cst_11 : f32 to vector<1x13x13xf32>
    %38 = arith.subf %37, %25 : vector<1x13x13xf32>
    %c0_12 = arith.constant 0 : index
    %c3 = arith.constant 3 : index
    %c0_13 = arith.constant 0 : index
    %c0_14 = arith.constant 0 : index
    %39 = vector.load %arg2[%c0_12, %c3, %c0_13, %c0_14] : memref<1x4x13x13xf32, #tpu.memory_space<vmem>>, vector<1x1x13x13xf32>
    %40 = vector.shape_cast %39 : vector<1x1x13x13xf32> to vector<1x13x13xf32>
    %41 = vector.shape_cast %38 : vector<1x13x13xf32> to vector<1x1x13x13xf32>
    tpu.vector_store %arg2[%c0_12, %c3, %c0_13, %c0_14], %41 {strides = array<i32>} : memref<1x4x13x13xf32, #tpu.memory_space<vmem>>, vector<1x1x13x13xf32>,
    %cst_15 = arith.constant 0.000000e+00 : f32
    %42 = vector.broadcast %cst_15 : f32 to vector<1x13x13xf32>
    %43 = arith.maximumf %17, %42 : vector<1x13x13xf32>
    %c0_16 = arith.constant 0 : index
    %c0_17 = arith.constant 0 : index
    %c0_18 = arith.constant 0 : index
    %c0_19 = arith.constant 0 : index
    %44 = vector.load %arg3[%c0_16, %c0_17, %c0_18, %c0_19] : memref<1x4x13x13xf32, #tpu.memory_space<vmem>>, vector<1x1x13x13xf32>
    %45 = vector.shape_cast %44 : vector<1x1x13x13xf32> to vector<1x13x13xf32>
    %46 = vector.shape_cast %43 : vector<1x13x13xf32> to vector<1x1x13x13xf32>
    tpu.vector_store %arg3[%c0_16, %c0_17, %c0_18, %c0_19], %46 {strides = array<i32>} : memref<1x4x13x13xf32, #tpu.memory_space<vmem>>, vector<1x1x13x13xf32>,
    %cst_20 = arith.constant 0.000000e+00 : f32
    %47 = vector.broadcast %cst_20 : f32 to vector<1x13x13xf32>
    %48 = arith.subf %47, %17 : vector<1x13x13xf32>
    %cst_21 = arith.constant 0.000000e+00 : f32
    %49 = vector.broadcast %cst_21 : f32 to vector<1x13x13xf32>
    %50 = arith.maximumf %48, %49 : vector<1x13x13xf32>
    %c0_22 = arith.constant 0 : index
    %c1_23 = arith.constant 1 : index
    %c0_24 = arith.constant 0 : index
    %c0_25 = arith.constant 0 : index
    %51 = vector.load %arg3[%c0_22, %c1_23, %c0_24, %c0_25] : memref<1x4x13x13xf32, #tpu.memory_space<vmem>>, vector<1x1x13x13xf32>
    %52 = vector.shape_cast %51 : vector<1x1x13x13xf32> to vector<1x13x13xf32>
    %53 = vector.shape_cast %50 : vector<1x13x13xf32> to vector<1x1x13x13xf32>
    tpu.vector_store %arg3[%c0_22, %c1_23, %c0_24, %c0_25], %53 {strides = array<i32>} : memref<1x4x13x13xf32, #tpu.memory_space<vmem>>, vector<1x1x13x13xf32>,
    %cst_26 = arith.constant 0.000000e+00 : f32
    %54 = vector.broadcast %cst_26 : f32 to vector<1x13x13xf32>
    %55 = arith.maximumf %25, %54 : vector<1x13x13xf32>
    %c0_27 = arith.constant 0 : index
    %c2_28 = arith.constant 2 : index
    %c0_29 = arith.constant 0 : index
    %c0_30 = arith.constant 0 : index
    %56 = vector.load %arg3[%c0_27, %c2_28, %c0_29, %c0_30] : memref<1x4x13x13xf32, #tpu.memory_space<vmem>>, vector<1x1x13x13xf32>
    %57 = vector.shape_cast %56 : vector<1x1x13x13xf32> to vector<1x13x13xf32>
    %58 = vector.shape_cast %55 : vector<1x13x13xf32> to vector<1x1x13x13xf32>
    tpu.vector_store %arg3[%c0_27, %c2_28, %c0_29, %c0_30], %58 {strides = array<i32>} : memref<1x4x13x13xf32, #tpu.memory_space<vmem>>, vector<1x1x13x13xf32>,
    %cst_31 = arith.constant 0.000000e+00 : f32
    %59 = vector.broadcast %cst_31 : f32 to vector<1x13x13xf32>
    %60 = arith.subf %59, %25 : vector<1x13x13xf32>
    %cst_32 = arith.constant 0.000000e+00 : f32
    %61 = vector.broadcast %cst_32 : f32 to vector<1x13x13xf32>
    %62 = arith.maximumf %60, %61 : vector<1x13x13xf32>
    %c0_33 = arith.constant 0 : index
    %c3_34 = arith.constant 3 : index
    %c0_35 = arith.constant 0 : index
    %c0_36 = arith.constant 0 : index
    %63 = vector.load %arg3[%c0_33, %c3_34, %c0_35, %c0_36] : memref<1x4x13x13xf32, #tpu.memory_space<vmem>>, vector<1x1x13x13xf32>
    %64 = vector.shape_cast %63 : vector<1x1x13x13xf32> to vector<1x13x13xf32>
    %65 = vector.shape_cast %62 : vector<1x13x13xf32> to vector<1x1x13x13xf32>
    tpu.vector_store %arg3[%c0_33, %c3_34, %c0_35, %c0_36], %65 {strides = array<i32>} : memref<1x4x13x13xf32, #tpu.memory_space<vmem>>, vector<1x1x13x13xf32>,
    return
  }
  func.func @transform_0(%arg0: i32) -> (i32, i32) {
    %c0_i32 = arith.constant 0 : i32
    %c0_i32_0 = arith.constant 0 : i32
    return %arg0, %c0_i32 : i32, i32
  }
  func.func @transform_1(%arg0: i32) -> (i32, i32, i32, i32) {
    %c0_i32 = arith.constant 0 : i32
    %c0_i32_0 = arith.constant 0 : i32
    %c0_i32_1 = arith.constant 0 : i32
    %c0_i32_2 = arith.constant 0 : i32
    return %arg0, %c0_i32, %c0_i32_0, %c0_i32_1 : i32, i32, i32, i32
  }
  func.func @transform_2(%arg0: i32) -> (i32, i32, i32, i32) {
    %c0_i32 = arith.constant 0 : i32
    %c0_i32_0 = arith.constant 0 : i32
    %c0_i32_1 = arith.constant 0 : i32
    %c0_i32_2 = arith.constant 0 : i32
    return %arg0, %c0_i32, %c0_i32_0, %c0_i32_1 : i32, i32, i32, i32
  }
}

</mosaic_0001>

<llo_original>
// kernel: tpu_custom_call.1
$region0: #{tpu_custom_call.1}
  #allocation0 [shape = 'u32[]', space=smem, size = 0x4, offset = 0x4, fixed_abs, tag = 'smem constant byte address 0x4 - core index']
  #allocation1 [shape = 'u32[144,128]{1,0:T(1,128)}', space=vmem, size = 0x12000, scoped, tag = 'internal scratch']
  %s0 = inlined_call_operand.hbm [shape: f32[32,128], index: 0, kind: input, shape index: {}]
  %s1 = inlined_call_operand.vmem [shape: f32[2,4,13,13], index: 1, kind: output, shape index: {0}]
  %s2 = inlined_call_operand.vmem [shape: f32[2,4,13,13], index: 2, kind: output, shape index: {1}]
  %3 = xla_tuple %s1, %s2
  %s4 = sld [smem:[#allocation0]]
  $region49: #{tpu_custom_call.1} parent=0
    _
  %s6 = ssub.s32 1, %s4
  %s7 = scalar_select 0, %s6, %s4
  $region1: #{tpu_custom_call.1} parent=0
    #allocation2 [shape = 'u8[16384]{0}', space=vmem, size = 0x4000, scoped, tag = 'input window, operand 0']
    #allocation3 [shape = 's32[2]{0}', space=sflag, size = 0x8, scoped, tag = 'scoped memory for tpu_custom_call.1']
    %8 = vsyncpa [#allocation3], 0
    %s9 = scalar_lea.sflag [#allocation3], 1
    %10 = vsyncpa %s9, 0
    loop: start=0, step=1, limit=4
    $region2: #{tpu_custom_call.1} parent=1 // loop_pre_header
      _
    $region3: #{tpu_custom_call.1} parent=1 // loop_header
      %s12 = sphi 0, %s16
      %p13 = scmp.ge.s32.totalorder %s12, 4
      %s22 = sphi 0, %s24
      %s25 = sphi 0, %s22
      %s26 = sphi 0, %s25
      %s42 = sphi 0, %s26
      %s48 = sphi 0, %s50
      %s51 = sphi 0, %s48
      %s52 = sphi 0, %s51
      %s68 = sphi 0, %s52
      %s74 = sphi 0, %s76
      %s77 = sphi 0, %s74
      %s78 = sphi 0, %s77
      %s94 = sphi 0, %s78
    $region4: #{tpu_custom_call.1} parent=1 // loop_header_branch
      %15 = sbr.rel (%p13) target = $region8
    $region5: #{tpu_custom_call.1} parent=1 // loop_body
      %s17 = ssub.s32 %s12, 1
      %s18 = ssub.s32 %s12, 2
      %s19 = sadd.s32 %s12, 1
      %s20 = ssub.s32 %s12, %s19
      %p21 = scmp.eq.s32.totalorder %s20, 0
      %s23 = sadd.s32 %s22, 1
      %s24 = scalar_select %p21, %s22, %s23
      %p27 = pneg %p21
      %p28 = scmp.eq.s32.totalorder %s12, 1
      %p29 = por %p27, %p28
      %p30 = scmp.ne.s32.totalorder %s22, %s25
      %p31 = scmp.eq.s32.totalorder %s12, 0
      %p32 = por %p30, %p31
      %p33 = scmp.ne.s32.totalorder %s22, %s25
      %p34 = scmp.eq.s32.totalorder %s17, 1
      %p35 = por %p33, %p34
      %p36 = scmp.ne.s32.totalorder %s25, %s26
      %p37 = scmp.eq.s32.totalorder %s17, 0
      %p38 = por %p36, %p37
      %p39 = scmp.ne.s32.totalorder %s25, %s26
      %p40 = scmp.eq.s32.totalorder %s18, 1
      %p41 = por %p39, %p40
      %p43 = scmp.ne.s32.totalorder %s26, %s42
      %p44 = scmp.eq.s32.totalorder %s18, 0
      %p45 = por %p43, %p44
      %s46 = ssub.s32 %s12, %s19
      %p47 = scmp.eq.s32.totalorder %s46, 0
      %s49 = sadd.s32 %s48, 1
      %s50 = scalar_select %p47, %s48, %s49
      %p53 = pneg %p47
      %p54 = scmp.eq.s32.totalorder %s12, 1
      %p55 = por %p53, %p54
      %p56 = scmp.ne.s32.totalorder %s48, %s51
      %p57 = scmp.eq.s32.totalorder %s12, 0
      %p58 = por %p56, %p57
      %p59 = scmp.ne.s32.totalorder %s48, %s51
      %p60 = scmp.eq.s32.totalorder %s17, 1
      %p61 = por %p59, %p60
      %p62 = scmp.ne.s32.totalorder %s51, %s52
      %p63 = scmp.eq.s32.totalorder %s17, 0
      %p64 = por %p62, %p63
      %p65 = scmp.ne.s32.totalorder %s51, %s52
      %p66 = scmp.eq.s32.totalorder %s18, 1
      %p67 = por %p65, %p66
      %p69 = scmp.ne.s32.totalorder %s52, %s68
      %p70 = scmp.eq.s32.totalorder %s18, 0
      %p71 = por %p69, %p70
      %s72 = ssub.s32 %s12, %s19
      %p73 = scmp.eq.s32.totalorder %s72, 0
      %s75 = sadd.s32 %s74, 1
      %s76 = scalar_select %p73, %s74, %s75
      %p79 = pneg %p73
      %p80 = scmp.eq.s32.totalorder %s12, 1
      %p81 = por %p79, %p80
      %p82 = scmp.ne.s32.totalorder %s74, %s77
      %p83 = scmp.eq.s32.totalorder %s12, 0
      %p84 = por %p82, %p83
      %p85 = scmp.ne.s32.totalorder %s74, %s77
      %p86 = scmp.eq.s32.totalorder %s17, 1
      %p87 = por %p85, %p86
      %p88 = scmp.ne.s32.totalorder %s77, %s78
      %p89 = scmp.eq.s32.totalorder %s17, 0
      %p90 = por %p88, %p89
      %p91 = scmp.ne.s32.totalorder %s77, %s78
      %p92 = scmp.eq.s32.totalorder %s18, 1
      %p93 = por %p91, %p92
      %p95 = scmp.ne.s32.totalorder %s78, %s94
      %p96 = scmp.eq.s32.totalorder %s18, 0
      %p97 = por %p95, %p96
      %p98 = scmp.le.s32.totalorder 1, %s12
      %p99 = scmp.lt.s32.totalorder %s12, 3
      %p100 = pnand %p98, %p99
      %p101 = pneg %p100
      // Predicated region
      $region9: #{tpu_custom_call.1} parent=5 // pred_check
        _
      $region10: #{tpu_custom_call.1} parent=5 // pred_check_branch
        %103 = sbr.rel (%p100) target = $region12
      $region11: #{tpu_custom_call.1} parent=5 // pred_region
        %s104 = ssub.s32 %s12, 1
      $region12: #{tpu_custom_call.1} parent=5 // pred_fallthru
        _
      %p105 = scmp.lt.s32.totalorder %s12, 2
      // Predicated region
      $region13: #{tpu_custom_call.1} parent=5 // pred_check
        %p106 = pneg %p105
      $region14: #{tpu_custom_call.1} parent=5 // pred_check_branch
        %108 = sbr.rel (%p106) target = $region16
      $region15: #{tpu_custom_call.1} parent=5 // pred_region
        // Predicated region
        $region17: #{tpu_custom_call.1} parent=15 // pred_check
          %p109 = pneg %p32
        $region18: #{tpu_custom_call.1} parent=15 // pred_check_branch
          %111 = sbr.rel (%p109) target = $region20
        $region19: #{tpu_custom_call.1} parent=15 // pred_region
          %s112 = sand.u32 %s22, 1
          %s113 = scalar_lea.sflag [#allocation3], %s112
          %s114 = sand.u32 %s22, 1
          %s115 = smul.addr %s114, 16
          %s116 = scalar_lea.vmem [#allocation2], %s115
          %s117 = smul.u32 2, %s12
          %s119 = ssub.s32 256, 256
          %120 = vsyncadd %s113, %s119
          %s121 = smul.addr %s117, 128
          %s122 = scalar_lea.hbm %s0, %s121
          %s123 = sshll.u32 %s116, 4
          %s124 = int_to_ptr.vmem [resolvable:$true] %s123
          %129 = dma.hbm_to_vmem [thread:$0]  %s122, 256, %s124, %s113, 128, 128, 8
        $region20: #{tpu_custom_call.1} parent=15 // pred_fallthru
          _
      $region16: #{tpu_custom_call.1} parent=5 // pred_fallthru
        _
      %p130 = scmp.le.s32.totalorder 1, %s12
      %p131 = scmp.lt.s32.totalorder %s12, 3
      %p132 = pnand %p130, %p131
      %p133 = pneg %p132
      // Predicated region
      $region21: #{tpu_custom_call.1} parent=5 // pred_check
        _
      $region22: #{tpu_custom_call.1} parent=5 // pred_check_branch
        %135 = sbr.rel (%p132) target = $region24
      $region23: #{tpu_custom_call.1} parent=5 // pred_region
        %s136 = ssub.s32 %s12, 1
        %s137 = sand.u32 %s25, 1
        %s138 = scalar_lea.sflag [#allocation3], %s137
        %s139 = sand.u32 %s25, 1
        %s140 = smul.addr %s139, 16
        %s141 = scalar_lea.vmem [#allocation2], %s140
        // Predicated region
        $region25: #{tpu_custom_call.1} parent=23 // pred_check
          %p142 = pneg %p38
        $region26: #{tpu_custom_call.1} parent=23 // pred_check_branch
          %144 = sbr.rel (%p142) target = $region28
        $region27: #{tpu_custom_call.1} parent=23 // pred_region
          %145 = dma.done %s138, 256
        $region28: #{tpu_custom_call.1} parent=23 // pred_fallthru
          _
        %s146 = sand.u32 %s25, 1
        %s147 = scalar_lea.sflag [#allocation3], %s146
        %s148 = sand.u32 %s25, 1
        %s149 = smul.addr %s148, 16
        %s150 = scalar_lea.vmem [#allocation2], %s149
        %p151 = pneg %p38
        %p152 = pneg %p35
        %p153 = pneg %p64
        %p154 = pneg %p61
        %p155 = scmp.lt.s32.totalorder %s17, 1
        %s156 = scalar_select %p155, %s17, 1
        %s157 = smul.addr %s156, 8
        %s158 = smul.addr %s157, 8
        %s159 = scalar_lea.vmem %s1, %s158
        %p160 = pneg %p90
        %p161 = pneg %p87
        %p162 = scmp.lt.s32.totalorder %s17, 1
        %s163 = scalar_select %p162, %s17, 1
        %s164 = smul.addr %s163, 8
        %s165 = smul.addr %s164, 8
        %s166 = scalar_lea.vmem %s2, %s165
        %s167 = smul.u32 2, %s17
        %p168 = scmp.lt.s32.totalorder %s17, 1
        %s169 = scalar_select %p168, %s17, 1
        %s170 = smul.addr %s169, 8
        %s171 = smul.addr %s170, 8
        %s172 = scalar_lea.vmem %s1, %s171
        %p173 = scmp.lt.s32.totalorder %s17, 1
        %s174 = scalar_select %p173, %s17, 1
        %s175 = smul.addr %s174, 8
        %s176 = smul.addr %s175, 8
        %s177 = scalar_lea.vmem %s2, %s176
        %v178 = vld [vmem:[%s141] sm:$0xff]
        %v179 = vld [vmem:[%s141 + $0x8] sm:$0xff]
        %180 = vrot.lane.b32.xlu0 %v178, 127
        %v181 = vpop.permute.xlu0 %180
        %182 = vrot.lane.b32.xlu0 %v179, 127
        %v183 = vpop.permute.xlu0 %182
        %184 = vrot.lane.b32.xlu0 %v178, 126
        %v185 = vpop.permute.xlu0 %184
        %186 = vrot.lane.b32.xlu0 %v179, 126
        %v187 = vpop.permute.xlu0 %186
        %188 = vrot.lane.b32.xlu0 %v178, 125
        %v189 = vpop.permute.xlu0 %188
        %190 = vrot.lane.b32.xlu0 %v179, 125
        %v191 = vpop.permute.xlu0 %190
        %v192 = vadd.f32 %v178, %v181
        %v193 = vadd.f32 %v179, %v183
        %v194 = vadd.f32 %v185, %v189
        %v195 = vadd.f32 %v187, %v191
        %v196 = vsub.f32 %v194, %v192
        %v197 = vsub.f32 %v195, %v193
        %v198 = vadd.f32 %v192, %v194
        %v199 = vadd.f32 %v193, %v195
        %vm202 = vcmask 1046528
        %v203 = vrot.slane %v196, 1
        %v204 = vrot.slane %v197, 1
        %v205 = vsel %vm202, %v203, %v204
        %v208 = vadd.f32 %v196, %v205
        %v209 = vadd.f32 %v197, %v204
        %vm210 = vcmask 1045504
        %v211 = vrot.slane %v196, 2
        %v212 = vrot.slane %v197, 2
        %v213 = vsel %vm210, %v211, %v212
        %v216 = vadd.f32 %v208, %v213
        %v217 = vadd.f32 %v209, %v212
        %vm218 = vcmask 1044480
        %v219 = vrot.slane %v196, 3
        %v220 = vrot.slane %v197, 3
        %v221 = vsel %vm218, %v219, %v220
        %v224 = vadd.f32 %v216, %v221
        %v225 = vadd.f32 %v217, %v220
        %v228 = vrot.slane %v198, 1
        %v229 = vrot.slane %v199, 1
        %v230 = vsel %vm202, %v228, %v229
        %v233 = vadd.f32 %v198, %v230
        %v234 = vadd.f32 %v199, %v229
        %vm237 = vcmask 1041408
        %v238 = vrot.slane %v233, 6
        %v239 = vrot.slane %v234, 6
        %v240 = vsel %vm237, %v238, %v239
        %v243 = vsub.f32 %v233, %v238
        %v244 = vsub.f32 %v234, %v240
        %vm245 = vcmask 105472
        %246 = vst.msk [vmem:[%s172] sm:$0xff] %vm245, %v224
        %vm247 = vcmask 102400
        %248 = vst.msk [vmem:[%s172 + $0x8] sm:$0x1f] %vm247, %v225
        %v249 = vsub.f32 0.0, %v224
        %v250 = vsub.f32 0.0, %v225
        %s251 = scalar_lea.vmem %s172, 16
        %252 = vst.msk [vmem:[%s251] sm:$0xff] %vm245, %v249
        %253 = vst.msk [vmem:[%s251 + $0x8] sm:$0x1f] %vm247, %v250
        %s254 = scalar_lea.vmem %s172, 32
        %vm255 = vcmask 105474
        %256 = vst.msk [vmem:[%s254 - $0x2] sm:$0xfc] %vm255, %v243
        %vm257 = vcmask 104448
        %258 = vst.msk [vmem:[%s254 + $0x6] sm:$0x7f] %vm257, %v244
        %v259 = vsub.f32 0.0, %v243
        %v260 = vsub.f32 0.0, %v244
        %s261 = scalar_lea.vmem %s172, 48
        %262 = vst.msk [vmem:[%s261 - $0x2] sm:$0xfc] %vm255, %v259
        %263 = vst.msk [vmem:[%s261 + $0x6] sm:$0x7f] %vm257, %v260
        %v264 = vmax.f32 %v224, 0.0
        %v265 = vmax.f32 %v225, 0.0
        %266 = vst.msk [vmem:[%s177] sm:$0xff] %vm245, %v264
        %267 = vst.msk [vmem:[%s177 + $0x8] sm:$0x1f] %vm247, %v265
        %v268 = vmax.f32 %v249, 0.0
        %v269 = vmax.f32 %v250, 0.0
        %s270 = scalar_lea.vmem %s177, 16
        %271 = vst.msk [vmem:[%s270] sm:$0xff] %vm245, %v268
        %272 = vst.msk [vmem:[%s270 + $0x8] sm:$0x1f] %vm247, %v269
        %v273 = vmax.f32 %v243, 0.0
        %v274 = vmax.f32 %v244, 0.0
        %s275 = scalar_lea.vmem %s177, 32
        %276 = vst.msk [vmem:[%s275 - $0x2] sm:$0xfc] %vm255, %v273
        %277 = vst.msk [vmem:[%s275 + $0x6] sm:$0x7f] %vm257, %v274
        %v278 = vmax.f32 %v259, 0.0
        %v279 = vmax.f32 %v260, 0.0
        %s280 = scalar_lea.vmem %s177, 48
        %281 = vst.msk [vmem:[%s280 - $0x2] sm:$0xfc] %vm255, %v278
        %282 = vst.msk [vmem:[%s280 + $0x6] sm:$0x7f] %vm257, %v279
        %p283 = scmp.lt.s32.totalorder %s17, 1
        %s284 = scalar_select %p283, %s17, 1
        %s285 = smul.addr %s284, 8
        %s286 = smul.addr %s285, 8
        %s287 = scalar_lea.vmem %s1, %s286
        %p288 = scmp.lt.s32.totalorder %s17, 1
        %s289 = scalar_select %p288, %s17, 1
        %s290 = smul.addr %s289, 8
        %s291 = smul.addr %s290, 8
        %s292 = scalar_lea.vmem %s2, %s291
        // Predicated region
        $region29: #{tpu_custom_call.1} parent=23 // pred_check
          %p293 = pneg %p61
        $region30: #{tpu_custom_call.1} parent=23 // pred_check_branch
          %295 = sbr.rel (%p293) target = $region32
        $region31: #{tpu_custom_call.1} parent=23 // pred_region
          _
        $region32: #{tpu_custom_call.1} parent=23 // pred_fallthru
          _
        // Predicated region
        $region33: #{tpu_custom_call.1} parent=23 // pred_check
          %p296 = pneg %p87
        $region34: #{tpu_custom_call.1} parent=23 // pred_check_branch
          %298 = sbr.rel (%p296) target = $region36
        $region35: #{tpu_custom_call.1} parent=23 // pred_region
          _
        $region36: #{tpu_custom_call.1} parent=23 // pred_fallthru
          _
      $region24: #{tpu_custom_call.1} parent=5 // pred_fallthru
        _
      %p299 = scmp.le.s32.totalorder 2, %s12
      // Predicated region
      $region37: #{tpu_custom_call.1} parent=5 // pred_check
        %p300 = pneg %p299
      $region38: #{tpu_custom_call.1} parent=5 // pred_check_branch
        %302 = sbr.rel (%p300) target = $region40
      $region39: #{tpu_custom_call.1} parent=5 // pred_region
        %s303 = ssub.s32 %s12, 2
        // Predicated region
        $region41: #{tpu_custom_call.1} parent=39 // pred_check
          %p304 = pneg %p67
        $region42: #{tpu_custom_call.1} parent=39 // pred_check_branch
          %306 = sbr.rel (%p304) target = $region44
        $region43: #{tpu_custom_call.1} parent=39 // pred_region
          %p307 = scmp.lt.s32.totalorder %s18, 1
          %s308 = scalar_select %p307, %s18, 1
          %s309 = smul.addr %s308, 8
          %s310 = smul.addr %s309, 8
          %s311 = scalar_lea.vmem %s1, %s310
        $region44: #{tpu_custom_call.1} parent=39 // pred_fallthru
          _
        // Predicated region
        $region45: #{tpu_custom_call.1} parent=39 // pred_check
          %p312 = pneg %p93
        $region46: #{tpu_custom_call.1} parent=39 // pred_check_branch
          %314 = sbr.rel (%p312) target = $region48
        $region47: #{tpu_custom_call.1} parent=39 // pred_region
          %p315 = scmp.lt.s32.totalorder %s18, 1
          %s316 = scalar_select %p315, %s18, 1
          %s317 = smul.addr %s316, 8
          %s318 = smul.addr %s317, 8
          %s319 = scalar_lea.vmem %s2, %s318
        $region48: #{tpu_custom_call.1} parent=39 // pred_fallthru
          _
      $region40: #{tpu_custom_call.1} parent=5 // pred_fallthru
        _
    $region6: #{tpu_custom_call.1} parent=1 // loop_footer
      %s16 = sadd.s32 1, %s12
    $region7: #{tpu_custom_call.1} parent=1 // loop_footer_branch
      %11 = sbr.rel target = $region3
    $region8: #{tpu_custom_call.1} parent=1 // loop_exit
      _
    %320 = vsyncpa [#allocation3], 1
    %s321 = scalar_lea.sflag [#allocation3], 1
    %322 = vsyncpa %s321, 1

</llo_original>
